<compile_context>
chip_gen: v7x
topology: tpu7x:2x2x1
jax: 0.10.0
libtpu: 0.0.40
codegen_flags: <defaults>
</compile_context>

<pallas_src>
import functools

import jax
import jax.numpy as jnp
from jax.experimental import pallas as pl
from jax.experimental.pallas import tpu as pltpu


def _focal_loss_kernel(x_ref, t_ref, out_ref, *, gamma, alpha0, alpha1,
                       use_alpha, hw_valid, need_mask):
    """One grid step.

    x_ref  : (1, C, s_tile, 128)  logits   (classes on leading axis,
                                            rows on sublane x lane)
    t_ref  : (1, s_tile, 128)     int32 targets
    out_ref: (1, s_tile, 128)     f32 per-lane partial loss sums (resident
                                  accumulator across the row-tile axis)
    """
    j = pl.program_id(1)

    @pl.when(j == 0)
    def _():
        out_ref[...] = jnp.zeros_like(out_ref)

    x = x_ref[0].astype(jnp.float32)        # (C, s_tile, 128)
    t = t_ref[0]                            # (s_tile, 128) int32

    # ---- log_softmax over the class axis (axis 0 -> pure VPU, no XLU) ----
    m = jnp.max(x, axis=0)                  # (s_tile, 128)
    z = x - m[None]                         # (C, s_tile, 128)
    denom = jnp.sum(jnp.exp(z), axis=0)     # (s_tile, 128)
    lse = jnp.log(denom)                    # (s_tile, 128)

    # ---- gather(1, target) via one-hot select over the class axis --------
    cls = jax.lax.broadcasted_iota(jnp.int32, x.shape, 0)      # (C, s_tile, 128)
    z_t = jnp.sum(jnp.where(cls == t[None], z, 0.0), axis=0)   # (s_tile, 128)

    logpt = z_t - lse                       # log p_t
    pt = jnp.exp(logpt)                     # NOTE: pt uses the un-alpha-scaled
                                            # logpt (matches the PyTorch quirk)

    if use_alpha:
        at = jnp.where(t != 0, jnp.float32(alpha1), jnp.float32(alpha0))
        logpt = logpt * at

    # ---- focal weighting: gamma is a trace-time constant ----------------
    g = float(gamma)
    one_minus_pt = jnp.maximum(1.0 - pt, 0.0)   # clamp rounding-ulp negatives
    if g == 0.0:
        loss = -logpt
    elif g.is_integer() and 0.0 < g <= 4.0:
        w = one_minus_pt
        for _ in range(int(g) - 1):             # VPU multiplies, no EUP power
            w = w * one_minus_pt
        loss = -(w * logpt)
    else:
        loss = -(jnp.power(one_minus_pt, jnp.float32(g)) * logpt)

    if need_mask:
        # Mask out padded rows (flat per-image hw index >= hw_valid).
        s_tile = t.shape[0]
        srow = jax.lax.broadcasted_iota(jnp.int32, t.shape, 0)
        lcol = jax.lax.broadcasted_iota(jnp.int32, t.shape, 1)
        ghw = (j * s_tile + srow) * 128 + lcol
        loss = jnp.where(ghw < hw_valid, loss, 0.0)

    # Element-wise accumulate into the resident per-lane accumulator.
    out_ref[...] += loss[None]


def focal_loss(logits, target, *, gamma=0.0, alpha=None, size_average=True,
               s_tile=None):
    """Pallas FocalLoss forward matching the PyTorch module semantics.

    logits: (N, C) or (N, C, H, W) float array (f32 or bf16)
    target: (N,) or (N, H, W) integer class indices
    """
    if logits.ndim > 2:
        n, c = logits.shape[0], logits.shape[1]
        hw = 1
        for d in logits.shape[2:]:
            hw *= d
    else:
        n, c = logits.shape
        hw = 1                                   # treat (N, C) as (N, C, 1)
        # TODO(synk): 2-D inputs keep 1 valid lane of 128; fine functionally,
        # a lane-dense 2-D variant would need a transpose of (N, C).

    # Contiguous trailing reshapes only -> no extra HBM pass.
    x3 = logits.reshape(n, c, hw)
    t2 = target.reshape(n, hw).astype(jnp.int32)

    rows_valid = n * hw

    # ---- tiling: rows on (sublane, lane); pick ~4 MiB logits blocks -------
    hw_pad = ((hw + 127) // 128) * 128
    S = hw_pad // 128                            # sublane-row groups of 128

    if s_tile is None:
        # Target ~4 MiB per logits block, but keep double-buffered
        # (logits + targets) + resident accumulator well inside VMEM.
        target_bytes = 4 * 1024 * 1024
        per_s_bytes = (c + 2) * 128 * 4          # logits + target + acc rows
        budget_s = (24 * 1024 * 1024) // (2 * per_s_bytes)
        s_tile = target_bytes // (c * 128 * 4)
        s_tile = min(s_tile, budget_s, 512)
        s_tile = max(8, (s_tile // 8) * 8)
    s_tile = min(s_tile, S)
    if s_tile < S and s_tile % 8 != 0:
        s_tile = max(8, (s_tile // 8) * 8)

    S_pad = ((S + s_tile - 1) // s_tile) * s_tile
    hw_full = S_pad * 128

    need_mask = hw_full != hw
    if need_mask:
        x3 = jnp.pad(x3, ((0, 0), (0, 0), (0, hw_full - hw)))
        t2 = jnp.pad(t2, ((0, 0), (0, hw_full - hw)))

    x4 = x3.reshape(n, c, S_pad, 128)            # free reshape
    t3 = t2.reshape(n, S_pad, 128)

    # ---- alpha handling, exactly like the module __init__ -----------------
    if isinstance(alpha, (float, int)):
        alpha_vec = (float(alpha), 1.0 - float(alpha))
    elif isinstance(alpha, (list, tuple)):
        alpha_vec = (float(alpha[0]), float(alpha[1]))
    else:
        alpha_vec = None

    kernel = functools.partial(
        _focal_loss_kernel,
        gamma=float(gamma),
        alpha0=alpha_vec[0] if alpha_vec is not None else 1.0,
        alpha1=alpha_vec[1] if alpha_vec is not None else 1.0,
        use_alpha=alpha_vec is not None,
        hw_valid=hw,
        need_mask=need_mask,
    )

    grid = (n, S_pad // s_tile)

    partials = pl.pallas_call(
        kernel,
        out_shape=jax.ShapeDtypeStruct((n, s_tile, 128), jnp.float32),
        grid_spec=pltpu.PrefetchScalarGridSpec(
            num_scalar_prefetch=0,
            grid=grid,
            in_specs=[
                pl.BlockSpec((1, c, s_tile, 128), lambda i, j: (i, 0, j, 0)),
                pl.BlockSpec((1, s_tile, 128), lambda i, j: (i, j, 0)),
            ],
            out_specs=pl.BlockSpec((1, s_tile, 128), lambda i, j: (i, 0, 0)),
        ),
        compiler_params=pltpu.CompilerParams(
            dimension_semantics=("parallel", "arbitrary"),
            vmem_limit_bytes=32 * 1024 * 1024,
        ),
    )(x4, t3)

    # Single cross-lane/sublane reduction, done once outside the hot loop.
    loss_sum = jnp.sum(partials)
    if size_average:
        return loss_sum / jnp.float32(rows_valid)
    return loss_sum


def _focal_loss_ref(logits, target, *, gamma=0.0, alpha=None,
                    size_average=True):
    """Pure-JAX reference mirroring the PyTorch forward."""
    if logits.ndim > 2:
        n, c = logits.shape[0], logits.shape[1]
        x2d = jnp.transpose(logits.reshape(n, c, -1), (0, 2, 1)).reshape(-1, c)
    else:
        x2d = logits
    t = target.reshape(-1).astype(jnp.int32)
    logsm = jax.nn.log_softmax(x2d.astype(jnp.float32), axis=1)
    logpt = jnp.take_along_axis(logsm, t[:, None], axis=1)[:, 0]
    pt = jnp.exp(logpt)
    if isinstance(alpha, (float, int)):
        a = jnp.array([alpha, 1.0 - alpha], jnp.float32)
        at = a[(t != 0).astype(jnp.int32)]
        logpt = logpt * at
    elif isinstance(alpha, (list, tuple)):
        a = jnp.asarray(alpha, jnp.float32)
        at = a[(t != 0).astype(jnp.int32)]
        logpt = logpt * at
    loss = -1.0 * (1.0 - pt) ** gamma * logpt
    return loss.mean() if size_average else loss.sum()


if __name__ == "__main__":
    key = jax.random.PRNGKey(0)
    kx, kt = jax.random.split(key)

    N, C, H, W = 2, 4, 16, 16                    # rows = 2*16*16 = 512
    x = jax.random.normal(kx, (N, C, H, W), dtype=jnp.float32)
    target = jax.random.randint(kt, (N, H, W), 0, C, dtype=jnp.int32)

    gamma, alpha = 2.0, 0.25                     # deterministic config

    out = focal_loss(x, target, gamma=gamma, alpha=alpha, size_average=True)
    out = jax.block_until_ready(out)

    ref = _focal_loss_ref(x, target, gamma=gamma, alpha=alpha,
                          size_average=True)
    assert jnp.allclose(out, ref, rtol=1e-5, atol=1e-6), (out, ref)

    print("KERNEL_OK")
</pallas_src>

<mosaic_0001>
module attributes {stable_mosaic.version = 11 : i64} {
  func.func @_focal_loss_kernel(%arg0: i32, %arg1: i32, %arg2: memref<1x4x2x128xf32, #tpu.memory_space<vmem>>, %arg3: memref<1x2x128xi32, #tpu.memory_space<vmem>>, %arg4: memref<1x2x128xf32, #tpu.memory_space<vmem>>) attributes {dimension_semantics = [#tpu.dimension_semantics<parallel>, #tpu.dimension_semantics<arbitrary>], iteration_bounds = array<i64: 2, 1>, scalar_prefetch = 0 : i64, scratch_operands = 0 : i64, tpu.core_type = #tpu.core_type<tc>, window_params = [{transform_indices = @transform_0, window_bounds = array<i64: 1, 4, 2, 128>}, {transform_indices = @transform_1, window_bounds = array<i64: 1, 2, 128>}, {transform_indices = @transform_2, window_bounds = array<i64: 1, 2, 128>}]} {
    %c0_i32 = arith.constant 0 : i32
    %0 = arith.cmpi eq, %arg1, %c0_i32 : i32
    %1 = arith.extui %0 : i1 to i32
    %c0_i32_0 = arith.constant 0 : i32
    %2 = arith.cmpi ne, %1, %c0_i32_0 : i32
    scf.if %2 {
      %cst_22 = arith.constant 0.000000e+00 : f32
      %41 = vector.broadcast %cst_22 : f32 to vector<1x2x128xf32>
      %c0_23 = arith.constant 0 : index
      %c0_24 = arith.constant 0 : index
      %c0_25 = arith.constant 0 : index
      %42 = vector.load %arg4[%c0_23, %c0_24, %c0_25] : memref<1x2x128xf32, #tpu.memory_space<vmem>>, vector<1x2x128xf32>
      tpu.vector_store %arg4[%c0_23, %c0_24, %c0_25], %41 {strides = array<i32>} : memref<1x2x128xf32, #tpu.memory_space<vmem>>, vector<1x2x128xf32>,
    } else {
    }
    %c0 = arith.constant 0 : index
    %c0_1 = arith.constant 0 : index
    %c0_2 = arith.constant 0 : index
    %c0_3 = arith.constant 0 : index
    %3 = vector.load %arg2[%c0, %c0_1, %c0_2, %c0_3] : memref<1x4x2x128xf32, #tpu.memory_space<vmem>>, vector<1x4x2x128xf32>
    %4 = vector.shape_cast %3 : vector<1x4x2x128xf32> to vector<4x2x128xf32>
    %c0_4 = arith.constant 0 : index
    %c0_5 = arith.constant 0 : index
    %c0_6 = arith.constant 0 : index
    %5 = vector.load %arg3[%c0_4, %c0_5, %c0_6] : memref<1x2x128xi32, #tpu.memory_space<vmem>>, vector<1x2x128xi32>
    %6 = vector.shape_cast %5 : vector<1x2x128xi32> to vector<2x128xi32>
    %cst = arith.constant dense<0xFF800000> : vector<2x128xf32>
    %7 = vector.multi_reduction <maximumf>, %4, %cst [0] : vector<4x2x128xf32> to vector<2x128xf32>
    %8 = vector.shape_cast %7 : vector<2x128xf32> to vector<1x2x128xf32>
    %9 = vector.broadcast %8 : vector<1x2x128xf32> to vector<4x2x128xf32>
    %10 = arith.subf %4, %9 : vector<4x2x128xf32>
    %11 = math.exp %10 : vector<4x2x128xf32>
    %cst_7 = arith.constant dense<0.000000e+00> : vector<2x128xf32>
    %12 = vector.multi_reduction <add>, %11, %cst_7 [0] : vector<4x2x128xf32> to vector<2x128xf32>
    %13 = math.log %12 : vector<2x128xf32>
    %14 = tpu.iota {dimensions = array<i32: 0>} : vector<4x2x128xi32>
    %15 = vector.shape_cast %6 : vector<2x128xi32> to vector<1x2x128xi32>
    %16 = vector.broadcast %15 : vector<1x2x128xi32> to vector<4x2x128xi32>
    %17 = arith.cmpi eq, %14, %16 : vector<4x2x128xi32>
    %cst_8 = arith.constant 0.000000e+00 : f32
    %18 = vector.broadcast %cst_8 : f32 to vector<4x2x128xf32>
    %19 = arith.select %17, %10, %18 : vector<4x2x128xi1>, vector<4x2x128xf32>
    %cst_9 = arith.constant dense<0.000000e+00> : vector<2x128xf32>
    %20 = vector.multi_reduction <add>, %19, %cst_9 [0] : vector<4x2x128xf32> to vector<2x128xf32>
    %21 = arith.subf %20, %13 : vector<2x128xf32>
    %22 = math.exp %21 : vector<2x128xf32>
    %c0_i32_10 = arith.constant 0 : i32
    %23 = vector.broadcast %c0_i32_10 : i32 to vector<2x128xi32>
    %24 = arith.cmpi ne, %6, %23 : vector<2x128xi32>
    %cst_11 = arith.constant 7.500000e-01 : f32
    %cst_12 = arith.constant 2.500000e-01 : f32
    %25 = vector.broadcast %cst_11 : f32 to vector<2x128xf32>
    %26 = vector.broadcast %cst_12 : f32 to vector<2x128xf32>
    %27 = arith.select %24, %25, %26 : vector<2x128xi1>, vector<2x128xf32>
    %28 = arith.mulf %21, %27 : vector<2x128xf32>
    %cst_13 = arith.constant 1.000000e+00 : f32
    %29 = vector.broadcast %cst_13 : f32 to vector<2x128xf32>
    %30 = arith.subf %29, %22 : vector<2x128xf32>
    %cst_14 = arith.constant 0.000000e+00 : f32
    %31 = vector.broadcast %cst_14 : f32 to vector<2x128xf32>
    %32 = arith.maximumf %30, %31 : vector<2x128xf32>
    %33 = arith.mulf %32, %32 : vector<2x128xf32>
    %34 = arith.mulf %33, %28 : vector<2x128xf32>
    %cst_15 = arith.constant 0.000000e+00 : f32
    %35 = vector.broadcast %cst_15 : f32 to vector<2x128xf32>
    %36 = arith.subf %35, %34 : vector<2x128xf32>
    %c0_16 = arith.constant 0 : index
    %c0_17 = arith.constant 0 : index
    %c0_18 = arith.constant 0 : index
    %37 = vector.load %arg4[%c0_16, %c0_17, %c0_18] : memref<1x2x128xf32, #tpu.memory_space<vmem>>, vector<1x2x128xf32>
    %38 = vector.shape_cast %36 : vector<2x128xf32> to vector<1x2x128xf32>
    %39 = arith.addf %37, %38 : vector<1x2x128xf32>
    %c0_19 = arith.constant 0 : index
    %c0_20 = arith.constant 0 : index
    %c0_21 = arith.constant 0 : index
    %40 = vector.load %arg4[%c0_19, %c0_20, %c0_21] : memref<1x2x128xf32, #tpu.memory_space<vmem>>, vector<1x2x128xf32>
    tpu.vector_store %arg4[%c0_19, %c0_20, %c0_21], %39 {strides = array<i32>} : memref<1x2x128xf32, #tpu.memory_space<vmem>>, vector<1x2x128xf32>,
    return
  }
  func.func @transform_0(%arg0: i32, %arg1: i32) -> (i32, i32, i32, i32) {
    %c0_i32 = arith.constant 0 : i32
    %c0_i32_0 = arith.constant 0 : i32
    %c0_i32_1 = arith.constant 0 : i32
    return %arg0, %c0_i32, %arg1, %c0_i32_0 : i32, i32, i32, i32
  }
  func.func @transform_1(%arg0: i32, %arg1: i32) -> (i32, i32, i32) {
    %c0_i32 = arith.constant 0 : i32
    %c0_i32_0 = arith.constant 0 : i32
    return %arg0, %arg1, %c0_i32 : i32, i32, i32
  }
  func.func @transform_2(%arg0: i32, %arg1: i32) -> (i32, i32, i32) {
    %c0_i32 = arith.constant 0 : i32
    %c0_i32_0 = arith.constant 0 : i32
    %c0_i32_1 = arith.constant 0 : i32
    return %arg0, %c0_i32, %c0_i32_0 : i32, i32, i32
  }
}

</mosaic_0001>

<llo_original>
// kernel: tpu_custom_call.1
$region0: #{tpu_custom_call.1}
  #allocation0 [shape = 'u32[]', space=smem, size = 0x4, offset = 0x4, fixed_abs, tag = 'smem constant byte address 0x4 - core index']
  #allocation1 [shape = 'u32[144,128]{1,0:T(1,128)}', space=vmem, size = 0x12000, scoped, tag = 'internal scratch']
  %s0 = inlined_call_operand.hbm [shape: f32[2,4,2,128], index: 0, kind: input, shape index: {}]
  %s1 = inlined_call_operand.hbm [shape: s32[2,2,128], index: 1, kind: input, shape index: {}]
  %s2 = inlined_call_operand.hbm [shape: f32[2,2,128], index: 2, kind: output, shape index: {}]
  %s3 = sld [smem:[#allocation0]]
  $region53: #{tpu_custom_call.1} parent=0
    _
  %s5 = ssub.s32 1, %s3
  %s6 = scalar_select 0, %s5, %s3
  $region1: #{tpu_custom_call.1} parent=0
    #allocation2 [shape = 'u8[8192]{0}', space=vmem, size = 0x2000, scoped, tag = 'input window, operand 0']
    #allocation3 [shape = 's32[2]{0}', space=sflag, size = 0x8, scoped, tag = 'scoped memory for tpu_custom_call.1']
    #allocation4 [shape = 's32[2]{0}', space=sflag, size = 0x8, scoped, tag = 'scoped memory for tpu_custom_call.1']
    #allocation5 [shape = 'u8[2048]{0}', space=vmem, size = 0x800, scoped, tag = 'input window, operand 1']
    #allocation6 [shape = 's32[2]{0}', space=sflag, size = 0x8, scoped, tag = 'scoped memory for tpu_custom_call.1']
    #allocation7 [shape = 'u8[2048]{0}', space=vmem, size = 0x800, scoped, tag = 'output window, operand 0']
    %7 = vsyncpa [#allocation3], 0
    %s8 = scalar_lea.sflag [#allocation3], 1
    %9 = vsyncpa %s8, 0
    %10 = vsyncpa [#allocation6], 0
    %s11 = scalar_lea.sflag [#allocation6], 1
    %12 = vsyncpa %s11, 0
    %13 = vsyncpa [#allocation4], 0
    %s14 = scalar_lea.sflag [#allocation4], 1
    %15 = vsyncpa %s14, 0
    loop: start=0, step=1, limit=4
    $region2: #{tpu_custom_call.1} parent=1 // loop_pre_header
      _
    $region3: #{tpu_custom_call.1} parent=1 // loop_header
      %s17 = sphi 0, %s21
      %p18 = scmp.ge.s32.totalorder %s17, 4
      %s24 = sphi 0, %s36
      %s25 = sphi 0, %s32
      %s26 = sphi 0, %s24
      %s27 = sphi 0, %s25
      %s28 = sphi 0, %s26
      %s29 = sphi 0, %s27
      %s41 = sphi 0, %s43
      %s44 = sphi 0, %s41
      %s45 = sphi 0, %s44
      %s61 = sphi 0, %s45
      %s69 = sphi 0, %s71
      %s72 = sphi 0, %s69
      %s73 = sphi 0, %s72
      %s89 = sphi 0, %s73
      %s95 = sphi 0, %s97
      %s98 = sphi 0, %s95
      %s99 = sphi 0, %s98
      %s115 = sphi 0, %s99
    $region4: #{tpu_custom_call.1} parent=1 // loop_header_branch
      %20 = sbr.rel (%p18) target = $region8
    $region5: #{tpu_custom_call.1} parent=1 // loop_body
      %s22 = ssub.s32 %s17, 1
      %s23 = ssub.s32 %s17, 2
      %s30 = sadd.s32 1, %s25
      %p31 = scmp.ge.s32.totalorder %s30, 1
      %s32 = scalar_select %p31, 0, %s30
      %s33 = sadd.s32 1, %s24
      %s34 = scalar_select %p31, %s33, %s24
      %p35 = scmp.ge.s32.totalorder %s34, 2
      %s36 = scalar_select %p35, 0, %s34
      %s37 = ssub.s32 %s24, %s36
      %s38 = ssub.s32 %s25, %s32
      %s39 = sor.u32 %s37, %s38
      %p40 = scmp.eq.s32.totalorder %s39, 0
      %s42 = sadd.s32 %s41, 1
      %s43 = scalar_select %p40, %s41, %s42
      %p46 = pneg %p40
      %p47 = scmp.eq.s32.totalorder %s17, 1
      %p48 = por %p46, %p47
      %p49 = scmp.ne.s32.totalorder %s41, %s44
      %p50 = scmp.eq.s32.totalorder %s17, 0
      %p51 = por %p49, %p50
      %p52 = scmp.ne.s32.totalorder %s41, %s44
      %p53 = scmp.eq.s32.totalorder %s22, 1
      %p54 = por %p52, %p53
      %p55 = scmp.ne.s32.totalorder %s44, %s45
      %p56 = scmp.eq.s32.totalorder %s22, 0
      %p57 = por %p55, %p56
      %p58 = scmp.ne.s32.totalorder %s44, %s45
      %p59 = scmp.eq.s32.totalorder %s23, 1
      %p60 = por %p58, %p59
      %p62 = scmp.ne.s32.totalorder %s45, %s61
      %p63 = scmp.eq.s32.totalorder %s23, 0
      %p64 = por %p62, %p63
      %s65 = ssub.s32 %s24, %s36
      %s66 = ssub.s32 %s25, %s32
      %s67 = sor.u32 %s65, %s66
      %p68 = scmp.eq.s32.totalorder %s67, 0
      %s70 = sadd.s32 %s69, 1
      %s71 = scalar_select %p68, %s69, %s70
      %p74 = pneg %p68
      %p75 = scmp.eq.s32.totalorder %s17, 1
      %p76 = por %p74, %p75
      %p77 = scmp.ne.s32.totalorder %s69, %s72
      %p78 = scmp.eq.s32.totalorder %s17, 0
      %p79 = por %p77, %p78
      %p80 = scmp.ne.s32.totalorder %s69, %s72
      %p81 = scmp.eq.s32.totalorder %s22, 1
      %p82 = por %p80, %p81
      %p83 = scmp.ne.s32.totalorder %s72, %s73
      %p84 = scmp.eq.s32.totalorder %s22, 0
      %p85 = por %p83, %p84
      %p86 = scmp.ne.s32.totalorder %s72, %s73
      %p87 = scmp.eq.s32.totalorder %s23, 1
      %p88 = por %p86, %p87
      %p90 = scmp.ne.s32.totalorder %s73, %s89
      %p91 = scmp.eq.s32.totalorder %s23, 0
      %p92 = por %p90, %p91
      %s93 = ssub.s32 %s24, %s36
      %p94 = scmp.eq.s32.totalorder %s93, 0
      %s96 = sadd.s32 %s95, 1
      %s97 = scalar_select %p94, %s95, %s96
      %p100 = pneg %p94
      %p101 = scmp.eq.s32.totalorder %s17, 1
      %p102 = por %p100, %p101
      %p103 = scmp.ne.s32.totalorder %s95, %s98
      %p104 = scmp.eq.s32.totalorder %s17, 0
      %p105 = por %p103, %p104
      %p106 = scmp.ne.s32.totalorder %s95, %s98
      %p107 = scmp.eq.s32.totalorder %s22, 1
      %p108 = por %p106, %p107
      %p109 = scmp.ne.s32.totalorder %s98, %s99
      %p110 = scmp.eq.s32.totalorder %s22, 0
      %p111 = por %p109, %p110
      %p112 = scmp.ne.s32.totalorder %s98, %s99
      %p113 = scmp.eq.s32.totalorder %s23, 1
      %p114 = por %p112, %p113
      %p116 = scmp.ne.s32.totalorder %s99, %s115
      %p117 = scmp.eq.s32.totalorder %s23, 0
      %p118 = por %p116, %p117
      %p119 = scmp.le.s32.totalorder 1, %s17
      %p120 = scmp.lt.s32.totalorder %s17, 3
      %p121 = pnand %p119, %p120
      %p122 = pneg %p121
      // Predicated region
      $region9: #{tpu_custom_call.1} parent=5 // pred_check
        _
      $region10: #{tpu_custom_call.1} parent=5 // pred_check_branch
        %124 = sbr.rel (%p121) target = $region12
      $region11: #{tpu_custom_call.1} parent=5 // pred_region
        %s125 = ssub.s32 %s17, 1
      $region12: #{tpu_custom_call.1} parent=5 // pred_fallthru
        _
      %p126 = scmp.lt.s32.totalorder %s17, 2
      // Predicated region
      $region13: #{tpu_custom_call.1} parent=5 // pred_check
        %p127 = pneg %p126
      $region14: #{tpu_custom_call.1} parent=5 // pred_check_branch
        %129 = sbr.rel (%p127) target = $region16
      $region15: #{tpu_custom_call.1} parent=5 // pred_region
        // Predicated region
        $region17: #{tpu_custom_call.1} parent=15 // pred_check
          %p130 = pneg %p51
        $region18: #{tpu_custom_call.1} parent=15 // pred_check_branch
          %132 = sbr.rel (%p130) target = $region20
        $region19: #{tpu_custom_call.1} parent=15 // pred_region
          %s133 = sand.u32 %s41, 1
          %s134 = scalar_lea.sflag [#allocation3], %s133
          %s135 = sand.u32 %s41, 1
          %s136 = smul.addr %s135, 8
          %s137 = scalar_lea.vmem [#allocation2], %s136
          %s139 = ssub.s32 128, 128
          %140 = vsyncadd %s134, %s139
          %s141 = smul.addr %s24, 4
          %s142 = sadd.s32 %s25, %s141
          %s143 = smul.addr %s142, 32
          %s144 = scalar_lea.hbm %s0, %s143
          %s145 = sshll.u32 %s137, 4
          %s146 = int_to_ptr.vmem [resolvable:$true] %s145
          %151 = dma.hbm_to_vmem [thread:$0]  %s144, 128, %s146, %s134, 32, 32, 2
        $region20: #{tpu_custom_call.1} parent=15 // pred_fallthru
          _
        // Predicated region
        $region21: #{tpu_custom_call.1} parent=15 // pred_check
          %p152 = pneg %p79
        $region22: #{tpu_custom_call.1} parent=15 // pred_check_branch
          %154 = sbr.rel (%p152) target = $region24
        $region23: #{tpu_custom_call.1} parent=15 // pred_region
          %s155 = sand.u32 %s69, 1
          %s156 = scalar_lea.sflag [#allocation6], %s155
          %s157 = sand.u32 %s69, 1
          %s158 = smul.addr %s157, 2
          %s159 = scalar_lea.vmem [#allocation5], %s158
          %s161 = ssub.s32 32, 32
          %162 = vsyncadd %s156, %s161
          %s163 = sadd.s32 %s25, %s24
          %s164 = smul.addr %s163, 32
          %s165 = scalar_lea.hbm %s1, %s164
          %s167 = sshll.u32 %s159, 4
          %s168 = int_to_ptr.vmem [resolvable:$true] %s167
          %170 = dma.hbm_to_vmem [thread:$0]  %s165, 32, %s168, %s156
        $region24: #{tpu_custom_call.1} parent=15 // pred_fallthru
          _
      $region16: #{tpu_custom_call.1} parent=5 // pred_fallthru
        _
      %p171 = scmp.le.s32.totalorder 1, %s17
      %p172 = scmp.lt.s32.totalorder %s17, 3
      %p173 = pnand %p171, %p172
      %p174 = pneg %p173
      // Predicated region
      $region25: #{tpu_custom_call.1} parent=5 // pred_check
        _
      $region26: #{tpu_custom_call.1} parent=5 // pred_check_branch
        %176 = sbr.rel (%p173) target = $region28
      $region27: #{tpu_custom_call.1} parent=5 // pred_region
        %s177 = ssub.s32 %s17, 1
        %s178 = sand.u32 %s44, 1
        %s179 = scalar_lea.sflag [#allocation3], %s178
        %s180 = sand.u32 %s44, 1
        %s181 = smul.addr %s180, 8
        %s182 = scalar_lea.vmem [#allocation2], %s181
        // Predicated region
        $region29: #{tpu_custom_call.1} parent=27 // pred_check
          %p183 = pneg %p57
        $region30: #{tpu_custom_call.1} parent=27 // pred_check_branch
          %185 = sbr.rel (%p183) target = $region32
        $region31: #{tpu_custom_call.1} parent=27 // pred_region
          %186 = dma.done %s179, 128
        $region32: #{tpu_custom_call.1} parent=27 // pred_fallthru
          _
        %s187 = sand.u32 %s72, 1
        %s188 = scalar_lea.sflag [#allocation6], %s187
        %s189 = sand.u32 %s72, 1
        %s190 = smul.addr %s189, 2
        %s191 = scalar_lea.vmem [#allocation5], %s190
        // Predicated region
        $region33: #{tpu_custom_call.1} parent=27 // pred_check
          %p192 = pneg %p85
        $region34: #{tpu_custom_call.1} parent=27 // pred_check_branch
          %194 = sbr.rel (%p192) target = $region36
        $region35: #{tpu_custom_call.1} parent=27 // pred_region
          %195 = dma.done %s188, 32
        $region36: #{tpu_custom_call.1} parent=27 // pred_fallthru
          _
        %s196 = sand.u32 %s44, 1
        %s197 = scalar_lea.sflag [#allocation3], %s196
        %s198 = sand.u32 %s44, 1
        %s199 = smul.addr %s198, 8
        %s200 = scalar_lea.vmem [#allocation2], %s199
        %p201 = pneg %p57
        %p202 = pneg %p54
        %s203 = sand.u32 %s72, 1
        %s204 = scalar_lea.sflag [#allocation6], %s203
        %s205 = sand.u32 %s72, 1
        %s206 = smul.addr %s205, 2
        %s207 = scalar_lea.vmem [#allocation5], %s206
        %p208 = pneg %p85
        %p209 = pneg %p82
        %p210 = pneg %p111
        %p211 = pneg %p108
        %s212 = sand.u32 %s98, 1
        %s213 = scalar_lea.sflag [#allocation4], %s212
        %s214 = sand.u32 %s98, 1
        %s215 = smul.addr %s214, 2
        %s216 = scalar_lea.vmem [#allocation7], %s215
        %p217 = scmp.eq.s32.totalorder %s27, 0
        // Predicated region
        $region37: #{tpu_custom_call.1} parent=27 // pred_check
          %p218 = pneg %p217
        $region38: #{tpu_custom_call.1} parent=27 // pred_check_branch
          %220 = sbr.rel (%p218) target = $region40
        $region39: #{tpu_custom_call.1} parent=27 // pred_region
          %221 = vst [vmem:[%s216] sm:$0x3] 0.0
        $region40: #{tpu_custom_call.1} parent=27 // pred_fallthru
          _
        %v222 = vld [vmem:[%s182] sm:$0x3]
        %v223 = vld [vmem:[%s182 + $0x2] sm:$0x3]
        %v224 = vld [vmem:[%s182 + $0x4] sm:$0x3]
        %v225 = vld [vmem:[%s182 + $0x6] sm:$0x3]
        %v226 = vld [vmem:[%s191] sm:$0x3]
        %vm227 = vcmask 1041408
        %v228 = vsel %vm227, %v222, -inf
        %v229 = vsel %vm227, %v223, -inf
        %v230 = vsel %vm227, %v224, -inf
        %v231 = vsel %vm227, %v225, -inf
        %v232 = vmax.f32 %v228, %v229
        %v233 = vmax.f32 %v230, %v231
        %v234 = vmax.f32 %v232, %v233
        %v235 = vsub.f32 %v222, %v234
        %v236 = vsub.f32 %v223, %v234
        %v237 = vsub.f32 %v224, %v234
        %v238 = vsub.f32 %v225, %v234
        %v239 = vmul.f32 %v235, 1.442695
        %v240 = vpow.pop %v239
        %v241 = vmul.f32 %v236, 1.442695
        %v242 = vpow.pop %v241
        %v243 = vmul.f32 %v237, 1.442695
        %v244 = vpow.pop %v243
        %v245 = vmul.f32 %v238, 1.442695
        %v246 = vpow.pop %v245
        %v247 = vsel %vm227, %v240, 0.0
        %v248 = vsel %vm227, %v242, 0.0
        %v249 = vadd.f32 %v247, %v248
        %v250 = vsel %vm227, %v244, 0.0
        %v251 = vadd.f32 %v249, %v250
        %v252 = vsel %vm227, %v246, 0.0
        %v253 = vadd.f32 %v251, %v252
        %v254 = vlog2.pop %v253
        %v255 = vmul.f32 %v254, 0.6931472
        %vm256 = vcmp.eq.s32.totalorder %v226, 0
        %vm257 = vcmp.eq.s32.totalorder %v226, 1
        %vm258 = vcmp.eq.s32.totalorder %v226, 2
        %vm259 = vcmp.eq.s32.totalorder %v226, 3
        %v260 = vsel %vm256, %v235, 0.0
        %v261 = vsel %vm257, %v236, 0.0
        %v262 = vsel %vm258, %v237, 0.0
        %v263 = vsel %vm259, %v238, 0.0
        %v264 = vsel %vm227, %v260, 0.0
        %v265 = vsel %vm227, %v261, 0.0
        %v266 = vadd.f32 %v264, %v265
        %v267 = vsel %vm227, %v262, 0.0
        %v268 = vadd.f32 %v266, %v267
        %v269 = vsel %vm227, %v263, 0.0
        %v270 = vadd.f32 %v268, %v269
        %v271 = vsub.f32 %v270, %v255
        %v272 = vmul.f32 %v271, 1.442695
        %v273 = vpow.pop %v272
        %vm274 = vcmp.ne.s32.totalorder %v226, 0
        %v275 = vsel %vm274, 0.75, 0.25
        %v276 = vmul.f32 %v271, %v275
        %v277 = vsub.f32 1.0, %v273
        %v278 = vmax.f32 %v277, 0.0
        %v279 = vmul.f32 %v278, %v278
        %v280 = vmul.f32 %v279, %v276
        %v281 = vsub.f32 0.0, %v280
        %v282 = vld [vmem:[%s216] sm:$0x3]
        %v283 = vadd.f32 %v282, %v281
        %284 = vst [vmem:[%s216] sm:$0x3] %v283
        %s285 = sand.u32 %s98, 1
        %s286 = scalar_lea.sflag [#allocation4], %s285
        %s287 = sand.u32 %s98, 1
        %s288 = smul.addr %s287, 2
        %s289 = scalar_lea.vmem [#allocation7], %s288
        // Predicated region
        $region41: #{tpu_custom_call.1} parent=27 // pred_check
          %p290 = pneg %p108
        $region42: #{tpu_custom_call.1} parent=27 // pred_check_branch
          %292 = sbr.rel (%p290) target = $region44
        $region43: #{tpu_custom_call.1} parent=27 // pred_region
          %s294 = ssub.s32 32, 32
          %295 = vsyncadd %s286, %s294
          %s296 = smul.addr %s26, 32
          %s297 = scalar_lea.hbm %s2, %s296
          %s299 = sshll.u32 %s289, 4
          %s300 = int_to_ptr.vmem [resolvable:$true] %s299
          %302 = dma.vmem_to_hbm [thread:$0]  %s300, 32, %s297, %s286
        $region44: #{tpu_custom_call.1} parent=27 // pred_fallthru
          _
      $region28: #{tpu_custom_call.1} parent=5 // pred_fallthru
        _
      %p303 = scmp.le.s32.totalorder 2, %s17
      // Predicated region
      $region45: #{tpu_custom_call.1} parent=5 // pred_check
        %p304 = pneg %p303
      $region46: #{tpu_custom_call.1} parent=5 // pred_check_branch
        %306 = sbr.rel (%p304) target = $region48
      $region47: #{tpu_custom_call.1} parent=5 // pred_region
        %s307 = ssub.s32 %s17, 2
        // Predicated region
        $region49: #{tpu_custom_call.1} parent=47 // pred_check
          %p308 = pneg %p114
        $region50: #{tpu_custom_call.1} parent=47 // pred_check_branch
          %310 = sbr.rel (%p308) target = $region52
        $region51: #{tpu_custom_call.1} parent=47 // pred_region
          %s311 = sand.u32 %s99, 1
          %s312 = scalar_lea.sflag [#allocation4], %s311
          %s313 = sand.u32 %s99, 1
          %s314 = smul.addr %s313, 2
          %s315 = scalar_lea.vmem [#allocation7], %s314
          %316 = dma.done %s312, 32
        $region52: #{tpu_custom_call.1} parent=47 // pred_fallthru
          _
      $region48: #{tpu_custom_call.1} parent=5 // pred_fallthru
        _
    $region6: #{tpu_custom_call.1} parent=1 // loop_footer
      %s21 = sadd.s32 1, %s17
    $region7: #{tpu_custom_call.1} parent=1 // loop_footer_branch
      %16 = sbr.rel target = $region3
    $region8: #{tpu_custom_call.1} parent=1 // loop_exit
      _
    %317 = vsyncpa [#allocation3], 1
    %s318 = scalar_lea.sflag [#allocation3], 1
    %319 = vsyncpa %s318, 1
    %320 = vsyncpa [#allocation6], 1
    %s321 = scalar_lea.sflag [#allocation6], 1
    %322 = vsyncpa %s321, 1
    %323 = vsyncpa [#allocation4], 1
    %s324 = scalar_lea.sflag [#allocation4], 1
    %325 = vsyncpa %s324, 1

</llo_original>
